<compile_context>
chip_gen: v7x
topology: tpu7x:2x2x1
jax: 0.10.0
libtpu: 0.0.40
codegen_flags: <defaults>
</compile_context>

<pallas_src>
import jax
import jax.numpy as jnp
from jax import lax
from jax.experimental import pallas as pl
from jax.experimental.pallas import tpu as pltpu


def _round_up(x, m):
    return ((x + m - 1) // m) * m


def _cdiv(a, b):
    return (a + b - 1) // b


def _vmem_capacity_bytes():
    """Per-TensorCore VMEM capacity, keyed off the device kind."""
    kind = ""
    try:
        kind = jax.devices()[0].device_kind.lower()
    except Exception:
        pass
    if "v7" in kind:
        return 64 * 1024 * 1024          # v7x: 64 MiB per TensorCore
    if "v2" in kind or "v3" in kind:
        return 16 * 1024 * 1024          # older parts: be conservative
    if "v4" in kind or "v5" in kind or "v6" in kind:
        return 128 * 1024 * 1024         # v4 / v5e / v5p / v6e: 128 MiB
    return 64 * 1024 * 1024              # unknown: conservative default


def _tile_footprint_bytes(tm, tn, tk, in_bytes):
    """Double-buffered VMEM footprint of one grid step (no extra scratch)."""
    return (2 * tm * tk * in_bytes       # x tile (double-buffered)
            + 2 * tn * tk * in_bytes     # W tile (double-buffered)
            + 2 * tm * tn * 4            # f32 output tile (= accumulator)
            + 2 * tn * 4)                # bias


def _choose_tiles(batch, input_dim, n_pad, in_bytes, budget):
    """Pick (tm, tn, tk) that fit `budget`, preferring full-K, then full-N
    residency (weight DMA'd exactly once), then the largest M tile."""
    if batch < 8:
        tm_cands = [batch]               # block dim == full array dim: legal
    else:
        m_cap = _round_up(batch, 8)
        cands = {t for t in (2048, 1024, 512, 256, 128, 64, 32, 16, 8)
                 if t <= m_cap}
        if m_cap <= 2048:
            cands.add(m_cap)
        tm_cands = sorted(cands, reverse=True)

    tk_cands = [input_dim] + [t for t in (4096, 2048, 1024, 512, 256, 128)
                              if t < input_dim]
    tn_cands = [n_pad] + [t for t in (2048, 1024, 512, 256, 128) if t < n_pad]

    for tk in tk_cands:                  # prefer full K (no K axis / padding)
        for tn in tn_cands:              # then full N (weight fully resident)
            for tm in tm_cands:          # then the biggest M tile that fits
                if _tile_footprint_bytes(tm, tn, tk, in_bytes) <= budget:
                    return tm, tn, tk
    return tm_cands[-1], 128, 128        # last resort: tiny tiles


def _linear_kernel(x_ref, w_ref, b_ref, o_ref):
    """One (M, N, K) grid step of y = x @ W^T + b.

    x_ref: [TM, TK]  activation tile
    w_ref: [TN, TK]  weight tile in PyTorch [out, in] layout (NT contraction)
    b_ref: [1,  TN]  bias tile
    o_ref: [TM, TN]  f32 output tile, resident across the K axis
    """
    part = lax.dot_general(
        x_ref[...], w_ref[...],
        dimension_numbers=(((1,), (1,)), ((), ())),   # contract feature dims
        preferred_element_type=jnp.float32,
    )
    k = pl.program_id(2)

    @pl.when(k == 0)
    def _():
        # Fold the bias into the first partial sum (no separate epilogue).
        o_ref[...] = part + b_ref[...]

    @pl.when(k > 0)
    def _():
        o_ref[...] += part


def lr_model_forward(x, weight, bias, *, use_bf16=False):
    """y = x @ weight.T + bias  (nn.Linear semantics).

    x:      [batch, input_dim]       float32
    weight: [output_dim, input_dim]  float32  (PyTorch layout, NOT transposed)
    bias:   [output_dim]             float32
    returns [batch, output_dim]      float32
    """
    batch, input_dim = x.shape
    output_dim, k_dim = weight.shape
    assert k_dim == input_dim
    assert bias.shape == (output_dim,)

    n_pad = _round_up(output_dim, 128)          # lane-dense output / bias / W-N
    in_dtype = jnp.bfloat16 if use_bf16 else x.dtype
    in_bytes = 2 if use_bf16 else x.dtype.itemsize

    cap = _vmem_capacity_bytes()
    budget = (3 * cap) // 4                     # headroom for Mosaic scratch
    tm, tn, tk = _choose_tiles(batch, input_dim, n_pad, in_bytes, budget)

    # ---- K tiling / padding (padding only when K must be tiled) -----------
    if tk >= input_dim:
        tk = input_dim
        k_pad = input_dim
    else:
        k_pad = _round_up(input_dim, tk)

    m_tiles = _cdiv(batch, tm)
    n_tiles = _cdiv(n_pad, tn)
    k_tiles = _cdiv(k_pad, tk)

    # Guarantee >= 2 M tiles (when the batch allows it and the weight stays
    # fully resident) so the "parallel" M axis can be sharded across v7x's
    # two TensorCores; one extra grid step is harmless on v5e/v6e.
    if m_tiles < 2 and batch >= 16 and n_tiles == 1 and k_tiles == 1:
        tm = _round_up(_cdiv(batch, 2), 8)
        m_tiles = _cdiv(batch, tm)

    # ---- operand prep (no M padding; K padded only when tiled) ------------
    x_in = x.astype(in_dtype) if use_bf16 else x
    if k_pad != input_dim:
        # Zero K padding is required for correctness of the contraction.
        x_in = jnp.zeros((batch, k_pad), x_in.dtype).at[:, :input_dim].set(x_in)

    w_in = weight.astype(in_dtype) if use_bf16 else weight
    if (n_pad, k_pad) != (output_dim, input_dim):
        w_in = (jnp.zeros((n_pad, k_pad), w_in.dtype)
                .at[:output_dim, :input_dim].set(w_in))

    b_in = (jnp.zeros((1, n_pad), jnp.float32)
            .at[0, :output_dim].set(bias.astype(jnp.float32)))

    # ---- VMEM limit & cost estimate ---------------------------------------
    fp = _tile_footprint_bytes(tm, tn, tk, in_bytes)
    vmem_limit = int(min(fp + fp // 4 + (1 << 20), budget))

    cost = pl.CostEstimate(
        flops=2 * batch * input_dim * output_dim,
        transcendentals=0,
        bytes_accessed=(x_in.size * x_in.dtype.itemsize
                        + w_in.size * w_in.dtype.itemsize
                        + b_in.size * 4
                        + batch * n_pad * 4),
    )

    grid = (m_tiles, n_tiles, k_tiles)

    out_p = pl.pallas_call(
        _linear_kernel,
        out_shape=jax.ShapeDtypeStruct((batch, n_pad), jnp.float32),
        grid_spec=pl.GridSpec(
            grid=grid,
            in_specs=[
                # x: new tile per (i, k); independent of j.
                pl.BlockSpec((tm, tk), lambda i, j, k: (i, k)),
                # W: index (j, k).  With n_tiles == k_tiles == 1 this is the
                # constant (0, 0) -> the weight is DMA'd exactly once and
                # stays VMEM-resident across every M tile.
                pl.BlockSpec((tn, tk), lambda i, j, k: (j, k)),
                # bias: depends only on j (constant when n_tiles == 1).
                pl.BlockSpec((1, tn), lambda i, j, k: (0, j)),
            ],
            # Output block index constant over k -> resident f32 accumulator.
            out_specs=pl.BlockSpec((tm, tn), lambda i, j, k: (i, j)),
        ),
        compiler_params=pltpu.CompilerParams(
            dimension_semantics=("parallel", "parallel", "arbitrary"),
            vmem_limit_bytes=vmem_limit,
        ),
        cost_estimate=cost,
    )(x_in, w_in, b_in)

    # Strip the lane padding of the output dim (M was never padded).
    return out_p[:, :output_dim]


if __name__ == "__main__":
    # Small shapes consistent with LRModel(input_dim, output_dim).
    batch, input_dim, output_dim = 8, 32, 16

    key = jax.random.PRNGKey(0)
    kx, kw, kb = jax.random.split(key, 3)

    x = jax.random.normal(kx, (batch, input_dim), dtype=jnp.float32)
    # Mimic nn.Linear's uniform(-1/sqrt(fan_in), 1/sqrt(fan_in)) init.
    bound = 1.0 / jnp.sqrt(jnp.float32(input_dim))
    weight = jax.random.uniform(kw, (output_dim, input_dim),
                                minval=-bound, maxval=bound, dtype=jnp.float32)
    bias = jax.random.uniform(kb, (output_dim,),
                              minval=-bound, maxval=bound, dtype=jnp.float32)

    y = lr_model_forward(x, weight, bias)
    y = jax.block_until_ready(y)

    # Reference check in plain JAX.
    y_ref = x @ weight.T + bias
    assert y.shape == (batch, output_dim)
    assert jnp.allclose(y, y_ref, atol=1e-5, rtol=1e-5)

    # TODO(synk): LRModel.train (MSE loss + Adam optimizer loop) is host-side
    # training logic, not part of the forward pass, and is not ported to Pallas.
    print("KERNEL_OK")
</pallas_src>

<mosaic_0001>
module attributes {stable_mosaic.version = 11 : i64} {
  func.func @_linear_kernel(%arg0: i32, %arg1: i32, %arg2: i32, %arg3: memref<8x32xf32, #tpu.memory_space<vmem>>, %arg4: memref<128x32xf32, #tpu.memory_space<vmem>>, %arg5: memref<1x128xf32, #tpu.memory_space<vmem>>, %arg6: memref<8x128xf32, #tpu.memory_space<vmem>>) attributes {dimension_semantics = [#tpu.dimension_semantics<parallel>, #tpu.dimension_semantics<parallel>, #tpu.dimension_semantics<arbitrary>], iteration_bounds = array<i64: 1, 1, 1>, scalar_prefetch = 0 : i64, scratch_operands = 0 : i64, tpu.core_type = #tpu.core_type<tc>, window_params = [{transform_indices = @transform_0, window_bounds = array<i64: 8, 32>}, {transform_indices = @transform_1, window_bounds = array<i64: 128, 32>}, {transform_indices = @transform_2, window_bounds = array<i64: 1, 128>}, {transform_indices = @transform_3, window_bounds = array<i64: 8, 128>}]} {
    %c0 = arith.constant 0 : index
    %c0_0 = arith.constant 0 : index
    %0 = vector.load %arg3[%c0, %c0_0] : memref<8x32xf32, #tpu.memory_space<vmem>>, vector<8x32xf32>
    %c0_1 = arith.constant 0 : index
    %c0_2 = arith.constant 0 : index
    %1 = vector.load %arg4[%c0_1, %c0_2] : memref<128x32xf32, #tpu.memory_space<vmem>>, vector<128x32xf32>
    %cst = arith.constant dense<0.000000e+00> : vector<8x128xf32>
    %2 = tpu.matmul %0, %1, %cst {dimension_numbers = #tpu.dot_dimension_numbers<[1], [1], [0], [0], [0, 0, 1, 0], [], []>} : vector<8x32xf32>, vector<128x32xf32>, vector<8x128xf32> -> vector<8x128xf32>
    %c0_i32 = arith.constant 0 : i32
    %3 = arith.cmpi eq, %arg2, %c0_i32 : i32
    %4 = arith.extui %3 : i1 to i32
    %c0_i32_3 = arith.constant 0 : i32
    %5 = arith.cmpi ne, %4, %c0_i32_3 : i32
    scf.if %5 {
      %c0_6 = arith.constant 0 : index
      %c0_7 = arith.constant 0 : index
      %9 = vector.load %arg5[%c0_6, %c0_7] : memref<1x128xf32, #tpu.memory_space<vmem>>, vector<1x128xf32>
      %10 = vector.broadcast %9 : vector<1x128xf32> to vector<8x128xf32>
      %11 = arith.addf %2, %10 : vector<8x128xf32>
      %c0_8 = arith.constant 0 : index
      %c0_9 = arith.constant 0 : index
      %12 = vector.load %arg6[%c0_8, %c0_9] : memref<8x128xf32, #tpu.memory_space<vmem>>, vector<8x128xf32>
      tpu.vector_store %arg6[%c0_8, %c0_9], %11 {strides = array<i32>} : memref<8x128xf32, #tpu.memory_space<vmem>>, vector<8x128xf32>,
    } else {
    }
    %c0_i32_4 = arith.constant 0 : i32
    %6 = arith.cmpi sgt, %arg2, %c0_i32_4 : i32
    %7 = arith.extui %6 : i1 to i32
    %c0_i32_5 = arith.constant 0 : i32
    %8 = arith.cmpi ne, %7, %c0_i32_5 : i32
    scf.if %8 {
      %c0_6 = arith.constant 0 : index
      %c0_7 = arith.constant 0 : index
      %9 = vector.load %arg6[%c0_6, %c0_7] : memref<8x128xf32, #tpu.memory_space<vmem>>, vector<8x128xf32>
      %10 = arith.addf %9, %2 : vector<8x128xf32>
      %c0_8 = arith.constant 0 : index
      %c0_9 = arith.constant 0 : index
      %11 = vector.load %arg6[%c0_8, %c0_9] : memref<8x128xf32, #tpu.memory_space<vmem>>, vector<8x128xf32>
      tpu.vector_store %arg6[%c0_8, %c0_9], %10 {strides = array<i32>} : memref<8x128xf32, #tpu.memory_space<vmem>>, vector<8x128xf32>,
    } else {
    }
    return
  }
  func.func @transform_0(%arg0: i32, %arg1: i32, %arg2: i32) -> (i32, i32) {
    %c0_i32 = arith.constant 0 : i32
    return %arg0, %arg2 : i32, i32
  }
  func.func @transform_1(%arg0: i32, %arg1: i32, %arg2: i32) -> (i32, i32) {
    %c0_i32 = arith.constant 0 : i32
    return %arg1, %arg2 : i32, i32
  }
  func.func @transform_2(%arg0: i32, %arg1: i32, %arg2: i32) -> (i32, i32) {
    %c0_i32 = arith.constant 0 : i32
    %c0_i32_0 = arith.constant 0 : i32
    return %c0_i32, %arg1 : i32, i32
  }
  func.func @transform_3(%arg0: i32, %arg1: i32, %arg2: i32) -> (i32, i32) {
    %c0_i32 = arith.constant 0 : i32
    return %arg0, %arg1 : i32, i32
  }
}

</mosaic_0001>

<llo_original>
// kernel: tpu_custom_call.1
$region0: #{tpu_custom_call.1}
  #allocation0 [shape = 'u32[]', space=smem, size = 0x4, offset = 0x4, fixed_abs, tag = 'smem constant byte address 0x4 - core index']
  #allocation1 [shape = 'u32[144,128]{1,0:T(1,128)}', space=vmem, size = 0x12000, scoped, tag = 'internal scratch']
  %s0 = inlined_call_operand.vmem [shape: f32[8,32], index: 0, kind: input, shape index: {}]
  %s1 = inlined_call_operand.vmem [shape: f32[128,32], index: 1, kind: input, shape index: {}]
  %s2 = inlined_call_operand.vmem [shape: f32[1,128], index: 2, kind: input, shape index: {}]
  %s3 = inlined_call_operand.hbm [shape: f32[8,128], index: 3, kind: output, shape index: {}]
  %s4 = sld [smem:[#allocation0]]
  $region30: #{tpu_custom_call.1} parent=0
    _
  %s6 = ssub.s32 1, %s4
  %s7 = scalar_select 0, %s6, %s4
  $region1: #{tpu_custom_call.1} parent=0
    #allocation2 [shape = 'u8[4096]{0}', space=vmem, size = 0x1000, scoped, tag = 'output window, operand 0, single buffered']
    #allocation3 [shape = 's32[1]{0}', space=sflag, size = 0x4, scoped, tag = 'scoped memory for tpu_custom_call.1']
    %8 = vsyncpa [#allocation3], 0
    // Predicated region
    $region2: #{tpu_custom_call.1} parent=1 // pred_check
      _
    $region3: #{tpu_custom_call.1} parent=1 // pred_check_branch
      %10 = sbr.rel (0) target = $region5
    $region4: #{tpu_custom_call.1} parent=1 // pred_region
      _
    $region5: #{tpu_custom_call.1} parent=1 // pred_fallthru
      _
    // Predicated region
    $region6: #{tpu_custom_call.1} parent=1 // pred_check
      _
    $region7: #{tpu_custom_call.1} parent=1 // pred_check_branch
      %12 = sbr.rel (0) target = $region9
    $region8: #{tpu_custom_call.1} parent=1 // pred_region
      _
    $region9: #{tpu_custom_call.1} parent=1 // pred_fallthru
      _
    // Predicated region
    $region10: #{tpu_custom_call.1} parent=1 // pred_check
      _
    $region11: #{tpu_custom_call.1} parent=1 // pred_check_branch
      %14 = sbr.rel (0) target = $region13
    $region12: #{tpu_custom_call.1} parent=1 // pred_region
      _
    $region13: #{tpu_custom_call.1} parent=1 // pred_fallthru
      _
    %v15 = vld [vmem:[%s0] sm:$0xff]
    %v16 = vld [vmem:[%s1] sm:$0xff]
    %v17 = vld [vmem:[%s1 + $0x8] sm:$0xff]
    %v18 = vld [vmem:[%s1 + $0x10] sm:$0xff]
    %v19 = vld [vmem:[%s1 + $0x18] sm:$0xff]
    %v20 = vld [vmem:[%s1 + $0x20] sm:$0xff]
    %v21 = vld [vmem:[%s1 + $0x28] sm:$0xff]
    %v22 = vld [vmem:[%s1 + $0x30] sm:$0xff]
    %v23 = vld [vmem:[%s1 + $0x38] sm:$0xff]
    %v24 = vld [vmem:[%s1 + $0x40] sm:$0xff]
    %v25 = vld [vmem:[%s1 + $0x48] sm:$0xff]
    %v26 = vld [vmem:[%s1 + $0x50] sm:$0xff]
    %v27 = vld [vmem:[%s1 + $0x58] sm:$0xff]
    %v28 = vld [vmem:[%s1 + $0x60] sm:$0xff]
    %v29 = vld [vmem:[%s1 + $0x68] sm:$0xff]
    %v30 = vld [vmem:[%s1 + $0x70] sm:$0xff]
    %v31 = vld [vmem:[%s1 + $0x78] sm:$0xff]
    %vm32 = vcmask 261120
    %v34 = vsel %vm32, %v15, 0
    %v37 = vsel %vm32, %v16, 0
    %v40 = vsel %vm32, %v17, 0
    %v43 = vsel %vm32, %v18, 0
    %v46 = vsel %vm32, %v19, 0
    %v49 = vsel %vm32, %v20, 0
    %v52 = vsel %vm32, %v21, 0
    %v55 = vsel %vm32, %v22, 0
    %v58 = vsel %vm32, %v23, 0
    %v61 = vsel %vm32, %v24, 0
    %v64 = vsel %vm32, %v25, 0
    %v67 = vsel %vm32, %v26, 0
    %v70 = vsel %vm32, %v27, 0
    %v73 = vsel %vm32, %v28, 0
    %v76 = vsel %vm32, %v29, 0
    %v79 = vsel %vm32, %v30, 0
    %v82 = vsel %vm32, %v31, 0
    %84 = vmatprep.subr.mxu0 0.0
    %85 = vmatpush1.xpose.msra.mxu0 %v37
    %86 = vmatprep.subr.mxu0 0.0
    %87 = vmatpush1.xpose.msra.mxu0 %v40
    %88 = vmatprep.subr.mxu0 0.0
    %89 = vmatpush1.xpose.msra.mxu0 %v43
    %90 = vmatprep.subr.mxu0 0.0
    %91 = vmatpush1.xpose.msra.mxu0 %v46
    %92 = vmatprep.subr.mxu0 0.0
    %93 = vmatpush1.xpose.msra.mxu0 %v49
    %94 = vmatprep.subr.mxu0 0.0
    %95 = vmatpush1.xpose.msra.mxu0 %v52
    %96 = vmatprep.subr.mxu0 0.0
    %97 = vmatpush1.xpose.msra.mxu0 %v55
    %98 = vmatprep.subr.mxu0 0.0
    %99 = vmatpush1.xpose.msra.mxu0 %v58
    %100 = vmatprep.subr.mxu0 0.0
    %101 = vmatpush1.xpose.msra.mxu0 %v61
    %102 = vmatprep.subr.mxu0 0.0
    %103 = vmatpush1.xpose.msra.mxu0 %v64
    %104 = vmatprep.subr.mxu0 0.0
    %105 = vmatpush1.xpose.msra.mxu0 %v67
    %106 = vmatprep.subr.mxu0 0.0
    %107 = vmatpush1.xpose.msra.mxu0 %v70
    %108 = vmatprep.subr.mxu0 0.0
    %109 = vmatpush1.xpose.msra.mxu0 %v73
    %110 = vmatprep.subr.mxu0 0.0
    %111 = vmatpush1.xpose.msra.mxu0 %v76
    %112 = vmatprep.subr.mxu0 0.0
    %113 = vmatpush1.xpose.msra.mxu0 %v79
    %114 = vmatprep.subr.mxu0 0.0
    %115 = vmatpush1.xpose.msra.mxu0 %v82
    %116 = vmatprep.subr.mxu0 0.0
    %117 = vmatpush1.xpose.msra.mxu0 0.0
    %118 = vmatprep.subr.mxu0 0.0
    %119 = vmatpush1.xpose.msra.mxu0 0.0
    %120 = vmatprep.subr.mxu0 0.0
    %121 = vmatpush1.xpose.msra.mxu0 0.0
    %122 = vmatprep.subr.mxu0 0.0
    %123 = vmatpush1.xpose.msra.mxu0 0.0
    %124 = vmatprep.subr.mxu0 0.0
    %125 = vmatpush1.xpose.msra.mxu0 0.0
    %126 = vmatprep.subr.mxu0 0.0
    %127 = vmatpush1.xpose.msra.mxu0 0.0
    %128 = vmatprep.subr.mxu0 0.0
    %129 = vmatpush1.xpose.msra.mxu0 0.0
    %130 = vmatprep.subr.mxu0 0.0
    %131 = vmatpush1.xpose.msra.mxu0 0.0
    %132 = vmatprep.subr.mxu0 0.0
    %133 = vmatpush1.xpose.msra.mxu0 0.0
    %134 = vmatprep.subr.mxu0 0.0
    %135 = vmatpush1.xpose.msra.mxu0 0.0
    %136 = vmatprep.subr.mxu0 0.0
    %137 = vmatpush1.xpose.msra.mxu0 0.0
    %138 = vmatprep.subr.mxu0 0.0
    %139 = vmatpush1.xpose.msra.mxu0 0.0
    %140 = vmatprep.subr.mxu0 0.0
    %141 = vmatpush1.xpose.msra.mxu0 0.0
    %142 = vmatprep.subr.mxu0 0.0
    %143 = vmatpush1.xpose.msra.mxu0 0.0
    %144 = vmatprep.subr.mxu0 0.0
    %145 = vmatpush1.xpose.msra.mxu0 0.0
    %146 = vmatprep.subr.mxu0 0.0
    %147 = vmatpush1.xpose.msra.mxu0 0.0
    %148 = vmatprep.mubr.f32.mxu0 0.0
    %149 = vmatmul.mubr.f32.gmra.mrb[0].mxu0 %v34
    %v150 = vpop.f32.mrb[0].mxu0
    %v151 = vadd.f32 0.0, %v150
    %v152 = vpop.f32.mrb[0].mxu0
    %153 = vdwg.mxu0
    %p154 = scmp.eq.s32.totalorder 0, 0
    // Predicated region
    $region14: #{tpu_custom_call.1} parent=1 // pred_check
      %p155 = pneg %p154
    $region15: #{tpu_custom_call.1} parent=1 // pred_check_branch
      %157 = sbr.rel (%p155) target = $region17
    $region16: #{tpu_custom_call.1} parent=1 // pred_region
      %v158 = vld [vmem:[%s2] sm:$0x1]
      %v160 = vlaneseq
      %v161 = vshrl.u32 %v160, 7
      %v162 = vsub.s32 0, %v161
      %v163 = vrot.slane %v158, %v162
      %v165 = vadd.f32 %v151, %v163
      %166 = vst [vmem:[#allocation2] sm:$0xff] %v165
    $region17: #{tpu_custom_call.1} parent=1 // pred_fallthru
      _
    %p167 = scmp.gt.s32.totalorder 0, 0
    // Predicated region
    $region18: #{tpu_custom_call.1} parent=1 // pred_check
      %p168 = pneg %p167
    $region19: #{tpu_custom_call.1} parent=1 // pred_check_branch
      %170 = sbr.rel (%p168) target = $region21
    $region20: #{tpu_custom_call.1} parent=1 // pred_region
      %v171 = vld [vmem:[#allocation2] sm:$0xff]
      %v172 = vadd.f32 %v171, %v151
      %173 = vst [vmem:[#allocation2] sm:$0xff] %v172
    $region21: #{tpu_custom_call.1} parent=1 // pred_fallthru
      _
    // Predicated region
    $region22: #{tpu_custom_call.1} parent=1 // pred_check
      _
    $region23: #{tpu_custom_call.1} parent=1 // pred_check_branch
      %175 = sbr.rel (0) target = $region25
    $region24: #{tpu_custom_call.1} parent=1 // pred_region
      %s177 = ssub.s32 128, 128
      %178 = vsyncadd [#allocation3], %s177
      %s180 = sshll.u32 [#allocation2], 4
      %s181 = int_to_ptr.vmem [resolvable:$true] %s180
      %183 = dma.vmem_to_hbm [thread:$0]  %s181, 128, %s3, [#allocation3]
    $region25: #{tpu_custom_call.1} parent=1 // pred_fallthru
      _
    // Predicated region
    $region26: #{tpu_custom_call.1} parent=1 // pred_check
      _
    $region27: #{tpu_custom_call.1} parent=1 // pred_check_branch
      %185 = sbr.rel (0) target = $region29
    $region28: #{tpu_custom_call.1} parent=1 // pred_region
      %186 = dma.done [#allocation3], 128
    $region29: #{tpu_custom_call.1} parent=1 // pred_fallthru
      _
    %187 = vsyncpa [#allocation3], 1

</llo_original>
